<compile_context>
chip_gen: v5e
topology: v5e:2x2
jax: 0.10.0
libtpu: 0.0.40
codegen_flags: <defaults>
</compile_context>

<pallas_src>
import math

import jax
import jax.numpy as jnp
from jax.experimental import pallas as pl
from jax.experimental.pallas import tpu as pltpu


# ---------------------------------------------------------------------------
# Parameter setup (equivalent of PositionalEncoding.__init__)
# ---------------------------------------------------------------------------
def make_pos_embedding(emb_size: int, maxlen: int = 5000) -> jnp.ndarray:
    den = jnp.exp(-jnp.arange(0, emb_size, 2, dtype=jnp.float32)
                  * (math.log(10000.0) / emb_size))
    pos = jnp.arange(0, maxlen, dtype=jnp.float32).reshape(maxlen, 1)
    pe = jnp.zeros((maxlen, emb_size), dtype=jnp.float32)
    pe = pe.at[:, 0::2].set(jnp.sin(pos * den))
    pe = pe.at[:, 1::2].set(jnp.cos(pos * den))
    return pe[:, None, :]  # (maxlen, 1, emb_size)


# ---------------------------------------------------------------------------
# Kernels
# ---------------------------------------------------------------------------
def _pe_kernel_eval(x_ref, pe_ref, o_ref):
    # x_ref: (TS, B, E), pe_ref: (TS, E) -> broadcast add over the batch dim.
    pe = pe_ref[...][:, None, :]
    o_ref[...] = (x_ref[...] + pe).astype(o_ref.dtype)


def _pe_kernel_train(x_ref, pe_ref, mask_ref, o_ref):
    # mask_ref already holds keep/(1-p) in the activation dtype, so the fused
    # dropout is a single elementwise multiply (mem-bound op, VALU has slack).
    y = x_ref[...] + pe_ref[...][:, None, :]
    o_ref[...] = (y * mask_ref[...]).astype(o_ref.dtype)


# ---------------------------------------------------------------------------
# Wrapper (equivalent of PositionalEncoding.forward)
# ---------------------------------------------------------------------------
def _round_up(x: int, m: int) -> int:
    return ((x + m - 1) // m) * m


def positional_encoding(token_embedding: jnp.ndarray,
                        pos_embedding: jnp.ndarray,
                        *,
                        dropout_rate: float = 0.0,
                        training: bool = False,
                        seed: int = 0) -> jnp.ndarray:
    S, B, E = token_embedding.shape
    dtype = token_embedding.dtype
    maxlen = pos_embedding.shape[0]

    # Layout plumbing (one-time, outside the hot loop):
    #   squeeze pe to 2D and cast to the activation dtype so the in-kernel add
    #   does not promote bf16 activations to f32.
    pe2d = pos_embedding.reshape(maxlen, E).astype(dtype)

    # Sequence-tile size: ~1 MiB per x/out block, multiple of 8 so the 2D pe
    # block satisfies the (8, 128) tiling rule on its sublane dim.
    itemsize = jnp.dtype(dtype).itemsize
    bytes_per_row = max(1, B * E * itemsize)
    ts = max(1, (1 << 20) // bytes_per_row)
    ts = max(8, (ts // 8) * 8)
    ts = min(ts, _round_up(S, 8))
    grid = (pl.cdiv(S, ts),)

    out_shape = jax.ShapeDtypeStruct((S, B, E), dtype)
    compiler_params = pltpu.CompilerParams(
        # "parallel" shards the sequence axis across the 2 TCs on v7x; neutral
        # on single-TC v5e/v6e.
        dimension_semantics=("parallel",),
        vmem_limit_bytes=32 * 1024 * 1024,
    )

    x_spec = pl.BlockSpec((ts, B, E), lambda i: (i, 0, 0))
    pe_spec = pl.BlockSpec((ts, E), lambda i: (i, 0))
    out_spec = pl.BlockSpec((ts, B, E), lambda i: (i, 0, 0))

    if (not training) or dropout_rate == 0.0:
        return pl.pallas_call(
            _pe_kernel_eval,
            out_shape=out_shape,
            grid=grid,
            in_specs=[x_spec, pe_spec],
            out_specs=out_spec,
            compiler_params=compiler_params,
        )(token_embedding, pe2d)

    # Dropout mask generated host/XLA-side (no in-kernel PRNG -> runs under
    # interpret mode and on-device alike), pre-scaled by 1/(1-p).
    keep_prob = 1.0 - float(dropout_rate)
    key = jax.random.PRNGKey(seed)
    keep = jax.random.bernoulli(key, keep_prob, (S, B, E))
    mask = (keep.astype(dtype) * jnp.asarray(1.0 / keep_prob, dtype)).astype(dtype)

    return pl.pallas_call(
        _pe_kernel_train,
        out_shape=out_shape,
        grid=grid,
        in_specs=[x_spec, pe_spec, x_spec],
        out_specs=out_spec,
        compiler_params=compiler_params,
    )(token_embedding, pe2d, mask)


# ---------------------------------------------------------------------------
# Demo / self-check
# ---------------------------------------------------------------------------
if __name__ == "__main__":
    SEQ, BATCH, EMB = 16, 8, 128   # small but lane-dense (E multiple of 128, B >= 8)
    MAXLEN = 64                    # small maxlen for the test; module default is 5000
    DROPOUT = 0.1

    key = jax.random.PRNGKey(0)
    token_embedding = jax.random.normal(key, (SEQ, BATCH, EMB), dtype=jnp.float32)
    pos_embedding = make_pos_embedding(EMB, maxlen=MAXLEN)

    # Eval-mode forward (dropout is identity) -- deterministic, checked vs reference.
    out_eval = positional_encoding(token_embedding, pos_embedding,
                                   dropout_rate=DROPOUT, training=False)
    out_eval = jax.block_until_ready(out_eval)
    ref = token_embedding + pos_embedding[:SEQ]
    assert out_eval.shape == (SEQ, BATCH, EMB)
    assert jnp.allclose(out_eval, ref, atol=1e-6), "eval-mode mismatch"

    # Training-mode forward (fused dropout): every element must be either
    # exactly dropped (0) or the kept value scaled by 1/(1-p).
    out_train = positional_encoding(token_embedding, pos_embedding,
                                    dropout_rate=DROPOUT, training=True, seed=0)
    out_train = jax.block_until_ready(out_train)
    assert out_train.shape == (SEQ, BATCH, EMB)
    scaled_ref = ref * (1.0 / (1.0 - DROPOUT))
    is_kept = out_train != 0
    assert jnp.allclose(jnp.where(is_kept, out_train, scaled_ref), scaled_ref,
                        atol=1e-5), "train-mode kept values mismatch"
    # Some elements must actually be dropped at p=0.1 over 16*8*128 elements.
    assert int(jnp.sum(~is_kept)) > 0, "train-mode dropped nothing"

    print("KERNEL_OK")
</pallas_src>

<mosaic_0001>
module attributes {stable_mosaic.version = 11 : i64} {
  func.func @_pe_kernel_eval(%arg0: i32, %arg1: memref<16x8x128xf32, #tpu.memory_space<vmem>>, %arg2: memref<16x128xf32, #tpu.memory_space<vmem>>, %arg3: memref<16x8x128xf32, #tpu.memory_space<vmem>>) attributes {dimension_semantics = [#tpu.dimension_semantics<parallel>], iteration_bounds = array<i64: 1>, scalar_prefetch = 0 : i64, scratch_operands = 0 : i64, tpu.core_type = #tpu.core_type<tc>, window_params = [{transform_indices = @transform_0, window_bounds = array<i64: 16, 8, 128>}, {transform_indices = @transform_1, window_bounds = array<i64: 16, 128>}, {transform_indices = @transform_2, window_bounds = array<i64: 16, 8, 128>}]} {
    %c0 = arith.constant 0 : index
    %c0_0 = arith.constant 0 : index
    %0 = vector.load %arg2[%c0, %c0_0] : memref<16x128xf32, #tpu.memory_space<vmem>>, vector<16x128xf32>
    %1 = vector.shape_cast %0 : vector<16x128xf32> to vector<16x1x128xf32>
    %c0_1 = arith.constant 0 : index
    %c0_2 = arith.constant 0 : index
    %c0_3 = arith.constant 0 : index
    %2 = vector.load %arg1[%c0_1, %c0_2, %c0_3] : memref<16x8x128xf32, #tpu.memory_space<vmem>>, vector<16x8x128xf32>
    %3 = vector.broadcast %1 : vector<16x1x128xf32> to vector<16x8x128xf32>
    %4 = arith.addf %2, %3 : vector<16x8x128xf32>
    %c0_4 = arith.constant 0 : index
    %c0_5 = arith.constant 0 : index
    %c0_6 = arith.constant 0 : index
    %5 = vector.load %arg3[%c0_4, %c0_5, %c0_6] : memref<16x8x128xf32, #tpu.memory_space<vmem>>, vector<16x8x128xf32>
    tpu.vector_store %arg3[%c0_4, %c0_5, %c0_6], %4 {strides = array<i32>} : memref<16x8x128xf32, #tpu.memory_space<vmem>>, vector<16x8x128xf32>,
    return
  }
  func.func @transform_0(%arg0: i32) -> (i32, i32, i32) {
    %c0_i32 = arith.constant 0 : i32
    %c0_i32_0 = arith.constant 0 : i32
    %c0_i32_1 = arith.constant 0 : i32
    return %arg0, %c0_i32, %c0_i32_0 : i32, i32, i32
  }
  func.func @transform_1(%arg0: i32) -> (i32, i32) {
    %c0_i32 = arith.constant 0 : i32
    %c0_i32_0 = arith.constant 0 : i32
    return %arg0, %c0_i32 : i32, i32
  }
  func.func @transform_2(%arg0: i32) -> (i32, i32, i32) {
    %c0_i32 = arith.constant 0 : i32
    %c0_i32_0 = arith.constant 0 : i32
    %c0_i32_1 = arith.constant 0 : i32
    return %arg0, %c0_i32, %c0_i32_0 : i32, i32, i32
  }
}

</mosaic_0001>

<llo_original>
// kernel: tpu_custom_call.1
$region0: #{tpu_custom_call.1}
  #allocation0 [shape = 'u32[]', space=smem, size = 0x4, offset = 0x4, fixed_abs, tag = 'smem constant byte address 0x4 - core index']
  #allocation1 [shape = 'u32[72,128]{1,0:T(1,128)}', space=vmem, size = 0x9000, scoped, tag = 'internal scratch']
  %s0 = inlined_call_operand.hbm [shape: f32[16,8,128], index: 0, kind: input, shape index: {}]
  %s1 = inlined_call_operand.hbm [shape: f32[64,128], index: 1, kind: input, shape index: {}]
  %s2 = inlined_call_operand.hbm [shape: f32[16,8,128], index: 2, kind: output, shape index: {}]
  %s3 = sld [smem:[#allocation0]]
  $region26: #{tpu_custom_call.1} parent=0
    _
  %s5 = ssub.s32 1, %s3
  %s6 = scalar_select 0, %s5, %s3
  $region1: #{tpu_custom_call.1} parent=0
    #allocation2 [shape = 'u8[65536]{0}', space=vmem, size = 0x10000, scoped, tag = 'input window, operand 0, single buffered']
    #allocation3 [shape = 's32[1]{0}', space=sflag, size = 0x4, scoped, tag = 'scoped memory for tpu_custom_call.1']
    #allocation4 [shape = 's32[1]{0}', space=sflag, size = 0x4, scoped, tag = 'scoped memory for tpu_custom_call.1']
    #allocation5 [shape = 'u8[8192]{0}', space=vmem, size = 0x2000, scoped, tag = 'input window, operand 1, single buffered']
    #allocation6 [shape = 's32[1]{0}', space=sflag, size = 0x4, scoped, tag = 'scoped memory for tpu_custom_call.1']
    #allocation7 [shape = 'u8[65536]{0}', space=vmem, size = 0x10000, scoped, tag = 'output window, operand 0, single buffered']
    %7 = vsyncpa [#allocation3], 0
    %8 = vsyncpa [#allocation6], 0
    %9 = vsyncpa [#allocation4], 0
    // Predicated region
    $region2: #{tpu_custom_call.1} parent=1 // pred_check
      _
    $region3: #{tpu_custom_call.1} parent=1 // pred_check_branch
      %11 = sbr.rel (0) target = $region5
    $region4: #{tpu_custom_call.1} parent=1 // pred_region
      %13 = vsyncadd [#allocation3], 0
      %s14 = sshll.u32 %s0, 4
      %s15 = int_to_ptr.hbm [resolvable:$true] %s14
      %s16 = sshll.u32 [#allocation2], 4
      %s17 = int_to_ptr.vmem [resolvable:$true] %s16
      %22 = dma.hbm_to_vmem [thread:$0]  %s15, 2048, %s17, [#allocation3], 128, 128, 8
    $region5: #{tpu_custom_call.1} parent=1 // pred_fallthru
      _
    // Predicated region
    $region6: #{tpu_custom_call.1} parent=1 // pred_check
      _
    $region7: #{tpu_custom_call.1} parent=1 // pred_check_branch
      %24 = sbr.rel (0) target = $region9
    $region8: #{tpu_custom_call.1} parent=1 // pred_region
      %26 = vsyncadd [#allocation6], 0
      %s27 = sshll.u32 %s1, 4
      %s28 = int_to_ptr.hbm [resolvable:$true] %s27
      %s29 = sshll.u32 [#allocation5], 4
      %s30 = int_to_ptr.vmem [resolvable:$true] %s29
      %35 = dma.hbm_to_vmem [thread:$0]  %s28, 256, %s30, [#allocation6], 128, 128, 8
    $region9: #{tpu_custom_call.1} parent=1 // pred_fallthru
      _
    // Predicated region
    $region10: #{tpu_custom_call.1} parent=1 // pred_check
      _
    $region11: #{tpu_custom_call.1} parent=1 // pred_check_branch
      %37 = sbr.rel (0) target = $region13
    $region12: #{tpu_custom_call.1} parent=1 // pred_region
      %39 = dma.done [#allocation3], 2048
    $region13: #{tpu_custom_call.1} parent=1 // pred_fallthru
      _
    // Predicated region
    $region14: #{tpu_custom_call.1} parent=1 // pred_check
      _
    $region15: #{tpu_custom_call.1} parent=1 // pred_check_branch
      %41 = sbr.rel (0) target = $region17
    $region16: #{tpu_custom_call.1} parent=1 // pred_region
      %43 = dma.done [#allocation6], 256
    $region17: #{tpu_custom_call.1} parent=1 // pred_fallthru
      _
    %v44 = vld [vmem:[#allocation5] sm:$0xff]
    %v45 = vld [vmem:[#allocation5 + $0x8] sm:$0xff]
    %v48 = vrot.slane %v44, 1
    %v49 = vrot.slane %v44, 2
    %v50 = vrot.slane %v44, 3
    %v51 = vrot.slane %v44, 4
    %v52 = vrot.slane %v44, 5
    %v53 = vrot.slane %v44, 6
    %v54 = vrot.slane %v44, 7
    %v55 = vrot.slane %v45, 1
    %v56 = vrot.slane %v45, 2
    %v57 = vrot.slane %v45, 3
    %v58 = vrot.slane %v45, 4
    %v59 = vrot.slane %v45, 5
    %v60 = vrot.slane %v45, 6
    %v61 = vrot.slane %v45, 7
    %v62 = vld [vmem:[#allocation2] sm:$0xff]
    %v63 = vld [vmem:[#allocation2 + $0x8] sm:$0xff]
    %v64 = vld [vmem:[#allocation2 + $0x10] sm:$0xff]
    %v65 = vld [vmem:[#allocation2 + $0x18] sm:$0xff]
    %v66 = vld [vmem:[#allocation2 + $0x20] sm:$0xff]
    %v67 = vld [vmem:[#allocation2 + $0x28] sm:$0xff]
    %v68 = vld [vmem:[#allocation2 + $0x30] sm:$0xff]
    %v69 = vld [vmem:[#allocation2 + $0x38] sm:$0xff]
    %v70 = vld [vmem:[#allocation2 + $0x40] sm:$0xff]
    %v71 = vld [vmem:[#allocation2 + $0x48] sm:$0xff]
    %v72 = vld [vmem:[#allocation2 + $0x50] sm:$0xff]
    %v73 = vld [vmem:[#allocation2 + $0x58] sm:$0xff]
    %v74 = vld [vmem:[#allocation2 + $0x60] sm:$0xff]
    %v75 = vld [vmem:[#allocation2 + $0x68] sm:$0xff]
    %v76 = vld [vmem:[#allocation2 + $0x70] sm:$0xff]
    %v77 = vld [vmem:[#allocation2 + $0x78] sm:$0xff]
    %v78 = vperm.slane %v44, 0
    %v79 = vperm.slane %v48, 0
    %v80 = vperm.slane %v49, 0
    %v81 = vperm.slane %v50, 0
    %v82 = vperm.slane %v51, 0
    %v83 = vperm.slane %v52, 0
    %v84 = vperm.slane %v53, 0
    %v85 = vperm.slane %v54, 0
    %v86 = vperm.slane %v45, 0
    %v87 = vperm.slane %v55, 0
    %v88 = vperm.slane %v56, 0
    %v89 = vperm.slane %v57, 0
    %v90 = vperm.slane %v58, 0
    %v91 = vperm.slane %v59, 0
    %v92 = vperm.slane %v60, 0
    %v93 = vperm.slane %v61, 0
    %v110 = vadd.f32 %v62, %v78
    %v111 = vadd.f32 %v63, %v79
    %v112 = vadd.f32 %v64, %v80
    %v113 = vadd.f32 %v65, %v81
    %v114 = vadd.f32 %v66, %v82
    %v115 = vadd.f32 %v67, %v83
    %v116 = vadd.f32 %v68, %v84
    %v117 = vadd.f32 %v69, %v85
    %v118 = vadd.f32 %v70, %v86
    %v119 = vadd.f32 %v71, %v87
    %v120 = vadd.f32 %v72, %v88
    %v121 = vadd.f32 %v73, %v89
    %v122 = vadd.f32 %v74, %v90
    %v123 = vadd.f32 %v75, %v91
    %v124 = vadd.f32 %v76, %v92
    %v125 = vadd.f32 %v77, %v93
    %126 = vst [vmem:[#allocation7] sm:$0xff] %v110
    %127 = vst [vmem:[#allocation7 + $0x8] sm:$0xff] %v111
    %128 = vst [vmem:[#allocation7 + $0x10] sm:$0xff] %v112
    %129 = vst [vmem:[#allocation7 + $0x18] sm:$0xff] %v113
    %130 = vst [vmem:[#allocation7 + $0x20] sm:$0xff] %v114
    %131 = vst [vmem:[#allocation7 + $0x28] sm:$0xff] %v115
    %132 = vst [vmem:[#allocation7 + $0x30] sm:$0xff] %v116
    %133 = vst [vmem:[#allocation7 + $0x38] sm:$0xff] %v117
    %134 = vst [vmem:[#allocation7 + $0x40] sm:$0xff] %v118
    %135 = vst [vmem:[#allocation7 + $0x48] sm:$0xff] %v119
    %136 = vst [vmem:[#allocation7 + $0x50] sm:$0xff] %v120
    %137 = vst [vmem:[#allocation7 + $0x58] sm:$0xff] %v121
    %138 = vst [vmem:[#allocation7 + $0x60] sm:$0xff] %v122
    %139 = vst [vmem:[#allocation7 + $0x68] sm:$0xff] %v123
    %140 = vst [vmem:[#allocation7 + $0x70] sm:$0xff] %v124
    %141 = vst [vmem:[#allocation7 + $0x78] sm:$0xff] %v125
    // Predicated region
    $region18: #{tpu_custom_call.1} parent=1 // pred_check
      _
    $region19: #{tpu_custom_call.1} parent=1 // pred_check_branch
      %143 = sbr.rel (0) target = $region21
    $region20: #{tpu_custom_call.1} parent=1 // pred_region
      %145 = vsyncadd [#allocation4], 0
      %s146 = sshll.u32 [#allocation7], 4
      %s147 = int_to_ptr.vmem [resolvable:$true] %s146
      %s148 = sshll.u32 %s2, 4
      %s149 = int_to_ptr.hbm [resolvable:$true] %s148
      %154 = dma.vmem_to_hbm [thread:$0]  %s147, 2048, %s149, [#allocation4], 128, 128, 8
    $region21: #{tpu_custom_call.1} parent=1 // pred_fallthru
      _
    // Predicated region
    $region22: #{tpu_custom_call.1} parent=1 // pred_check
      _
    $region23: #{tpu_custom_call.1} parent=1 // pred_check_branch
      %156 = sbr.rel (0) target = $region25
    $region24: #{tpu_custom_call.1} parent=1 // pred_region
      %158 = dma.done [#allocation4], 2048
    $region25: #{tpu_custom_call.1} parent=1 // pred_fallthru
      _
    %159 = vsyncpa [#allocation3], 1
    %160 = vsyncpa [#allocation6], 1
    %161 = vsyncpa [#allocation4], 1

</llo_original>
